<compile_context>
chip_gen: v5e
topology: v5e:2x2
jax: 0.10.0
libtpu: 0.0.40
codegen_flags: <defaults>
</compile_context>

<pallas_src>
import functools

import jax
import jax.numpy as jnp
from jax import lax
from jax.experimental import pallas as pl
from jax.experimental.pallas import tpu as pltpu

# Keep the eager fold + pure-JAX reference in full f32 (default TPU matmul
# precision can drop to bf16 passes and break the 1e-4 comparison at large B).
jax.config.update("jax_default_matmul_precision", "highest")

BN_EPS = 1e-5
IN_DIM = 3
OUT_DIM = 5
LANE = 128
SLAB_ROWS = 16      # rows 0..2: W12^T, row 3: b12, rows 4..8: W34^T, row 9: b34
MAX_TILE_B = 1024   # batch rows per grid step (multiple of 8)


def _round_up(n, m):
    return ((n + m - 1) // m) * m


def _fused_kernel(x_ref, p_ref, out_ref, s1_ref, s2_ref, *, batch, tile_b):
    """Grid = (pass, batch_tile).  pass 0: BN stats.  pass 1: normalize + output."""
    p = pl.program_id(0)
    i = pl.program_id(1)
    inv_n = 1.0 / float(batch)

    x = x_ref[...]                                              # (tile_b, 3) f32

    # Stage 1: fused linear1∘linear2 — K=3 broadcast-FMA, tree-added partials.
    h2 = ((p_ref[3:4, :] + x[:, 0:1] * p_ref[0:1, :])
          + (x[:, 1:2] * p_ref[1:2, :] + x[:, 2:3] * p_ref[2:3, :]))  # (tile_b,128)

    @pl.when(p == 0)
    def _stats_pass():
        @pl.when(i == 0)
        def _init():
            s1_ref[...] = jnp.zeros_like(s1_ref)
            s2_ref[...] = jnp.zeros_like(s2_ref)

        # Mask rows past the true batch (wrapper zero-pads to a tile multiple).
        row = lax.broadcasted_iota(jnp.int32, (tile_b, 1), 0)
        valid = row < (batch - i * tile_b)
        h2m = jnp.where(valid, h2, 0.0)
        s1_ref[...] += jnp.sum(h2m, axis=0, keepdims=True)
        s2_ref[...] += jnp.sum(h2m * h2m, axis=0, keepdims=True)

    @pl.when(p == 1)
    def _output_pass():
        mean = s1_ref[...] * inv_n
        var = jnp.maximum(s2_ref[...] * inv_n - mean * mean, 0.0)   # biased var
        h2n = (h2 - mean) * lax.rsqrt(var + BN_EPS)                 # gamma/beta folded

        # Stage 2: fused BN-affine∘linear3∘linear4 — K=5 broadcast-FMA, tree-added.
        t0 = p_ref[9:10, :] + h2n[:, 0:1] * p_ref[4:5, :]
        t1 = h2n[:, 1:2] * p_ref[5:6, :] + h2n[:, 2:3] * p_ref[6:7, :]
        t2 = h2n[:, 3:4] * p_ref[7:8, :] + h2n[:, 4:5] * p_ref[8:9, :]
        out = (t0 + t1) + t2                                        # (tile_b, 128)
        out_ref[...] = out[:, :OUT_DIM].astype(out_ref.dtype)       # (tile_b, 5)


def _fold_and_pack(params):
    """Exact folding of the 4 linears + BN affine into two stages, pre-transposed
    and packed into a single (16,128) f32 slab. Call ONCE at init."""
    w1, b1 = params["w1"], params["b1"]                  # (4,3), (4,)
    w2, b2 = params["w2"], params["b2"]                  # (5,4), (5,)
    gamma, beta = params["bn_gamma"], params["bn_beta"]  # (5,), (5,)
    w3, b3 = params["w3"], params["b3"]                  # (6,5), (6,)
    w4, b4 = params["w4"], params["b4"]                  # (5,6), (5,)

    w12 = w2 @ w1                                        # (5,3)
    b12 = b1 @ w2.T + b2                                 # (5,)
    w3p = w3 * gamma[None, :]                            # (6,5)
    b3p = b3 + beta @ w3.T                               # (6,)
    w34 = w4 @ w3p                                       # (5,5)
    b34 = b3p @ w4.T + b4                                # (5,)

    slab = jnp.zeros((SLAB_ROWS, LANE), jnp.float32)
    slab = slab.at[0:3, 0:OUT_DIM].set(w12.T)
    slab = slab.at[3, 0:OUT_DIM].set(b12)
    slab = slab.at[4:9, 0:OUT_DIM].set(w34.T)
    slab = slab.at[9, 0:OUT_DIM].set(b34)
    return slab


@jax.jit
def model_forward(x, slab):
    """x: (B, 3) float32, slab: pre-folded (16,128) params. Returns (B, 5)."""
    batch = x.shape[0]
    tile_b = min(MAX_TILE_B, _round_up(batch, 8))
    b_pad = _round_up(batch, tile_b)
    if b_pad != batch:
        x = jnp.pad(x, ((0, b_pad - batch), (0, 0)))
    n_tiles = b_pad // tile_b

    kernel = functools.partial(_fused_kernel, batch=batch, tile_b=tile_b)

    out = pl.pallas_call(
        kernel,
        out_shape=jax.ShapeDtypeStruct((b_pad, OUT_DIM), jnp.float32),
        grid_spec=pltpu.PrefetchScalarGridSpec(
            num_scalar_prefetch=0,
            grid=(2, n_tiles),                        # (pass, batch tile)
            in_specs=[
                pl.BlockSpec((tile_b, IN_DIM), lambda p, i: (i, 0)),
                pl.BlockSpec((SLAB_ROWS, LANE), lambda p, i: (0, 0)),
            ],
            # During the stats pass the output block index stays (0,0) so no
            # (garbage) writeback happens; pass 1 walks and flushes every tile.
            out_specs=pl.BlockSpec((tile_b, OUT_DIM), lambda p, i: (i * p, 0)),
            scratch_shapes=[
                pltpu.VMEM((1, LANE), jnp.float32),   # sum(h2)
                pltpu.VMEM((1, LANE), jnp.float32),   # sum(h2^2)
            ],
        ),
        compiler_params=pltpu.CompilerParams(
            # Both axes carry state (stats scratch) -> must stay sequential.
            dimension_semantics=("arbitrary", "arbitrary"),
        ),
    )(x, slab)

    return out[:batch]


def init_params():
    """Deterministic init mirroring nn.Linear(in,out): weight (out,in), bias (out,).
    BatchNorm1d(5): gamma=1, beta=0 (fresh module, training mode)."""
    key = jax.random.PRNGKey(42)
    ks = jax.random.split(key, 8)

    def linear(kw, kb, in_dim, out_dim):
        bound = 1.0 / jnp.sqrt(in_dim)
        w = jax.random.uniform(kw, (out_dim, in_dim), jnp.float32, -bound, bound)
        b = jax.random.uniform(kb, (out_dim,), jnp.float32, -bound, bound)
        return w, b

    w1, b1 = linear(ks[0], ks[1], 3, 4)
    w2, b2 = linear(ks[2], ks[3], 4, 5)
    w3, b3 = linear(ks[4], ks[5], 5, 6)
    w4, b4 = linear(ks[6], ks[7], 6, 5)

    return {
        "w1": w1, "b1": b1,
        "w2": w2, "b2": b2,
        "bn_gamma": jnp.ones((5,), jnp.float32),
        "bn_beta": jnp.zeros((5,), jnp.float32),
        "w3": w3, "b3": b3,
        "w4": w4, "b4": b4,
    }


def _reference_forward(x, p):
    """Pure-JAX unfused reference (mirrors the PyTorch module op-by-op)."""
    h = x @ p["w1"].T + p["b1"]
    h = h @ p["w2"].T + p["b2"]
    m = jnp.mean(h, axis=0, keepdims=True)
    v = jnp.mean((h - m) ** 2, axis=0, keepdims=True)
    h = (h - m) / jnp.sqrt(v + BN_EPS) * p["bn_gamma"] + p["bn_beta"]
    h = h @ p["w3"].T + p["b3"]
    return h @ p["w4"].T + p["b4"]


if __name__ == "__main__":
    params = init_params()
    slab = _fold_and_pack(params)            # folded once at init (perf review #1)

    # Primary small test (module-consistent shape).
    B = 8
    x = jax.random.normal(jax.random.PRNGKey(0), (B, IN_DIM), dtype=jnp.float32)
    out = jax.block_until_ready(model_forward(x, slab))
    ref = _reference_forward(x, params)
    assert out.shape == (B, OUT_DIM), out.shape
    assert jnp.allclose(out, ref, atol=1e-4, rtol=1e-4), "mismatch vs JAX reference (B=8)"

    # Secondary check: non-multiple-of-8 batch (exercises row masking / padding).
    B2 = 20
    x2 = jax.random.normal(jax.random.PRNGKey(1), (B2, IN_DIM), dtype=jnp.float32)
    out2 = jax.block_until_ready(model_forward(x2, slab))
    ref2 = _reference_forward(x2, params)
    assert out2.shape == (B2, OUT_DIM)
    assert jnp.allclose(out2, ref2, atol=1e-4, rtol=1e-4), "mismatch vs JAX reference (B=20)"

    # Tertiary check: multi-tile batch (exercises two-pass BN stats accumulation
    # across grid steps and the revisit-output index_map). Still tiny in bytes.
    B3 = 2050
    x3 = jax.random.normal(jax.random.PRNGKey(2), (B3, IN_DIM), dtype=jnp.float32)
    out3 = jax.block_until_ready(model_forward(x3, slab))
    ref3 = _reference_forward(x3, params)
    assert out3.shape == (B3, OUT_DIM)
    assert jnp.allclose(out3, ref3, atol=2e-4, rtol=2e-4), "mismatch vs JAX reference (B=2050)"

    print("KERNEL_OK")
</pallas_src>

<mosaic_0001>
module attributes {stable_mosaic.version = 11 : i64} {
  func.func @_fused_kernel(%arg0: i32, %arg1: i32, %arg2: memref<8x3xf32, #tpu.memory_space<vmem>>, %arg3: memref<16x128xf32, #tpu.memory_space<vmem>>, %arg4: memref<8x5xf32, #tpu.memory_space<vmem>>, %arg5: memref<1x128xf32, #tpu.memory_space<vmem>>, %arg6: memref<1x128xf32, #tpu.memory_space<vmem>>) attributes {dimension_semantics = [#tpu.dimension_semantics<arbitrary>, #tpu.dimension_semantics<arbitrary>], iteration_bounds = array<i64: 2, 1>, scalar_prefetch = 0 : i64, scratch_operands = 2 : i64, tpu.core_type = #tpu.core_type<tc>, window_params = [{transform_indices = @transform_0, window_bounds = array<i64: 8, 3>}, {pipeline_mode = #tpu.pipeline_mode<synchronous>, transform_indices = @transform_1, window_bounds = array<i64: 16, 128>}, {transform_indices = @transform_2, window_bounds = array<i64: 8, 5>}]} {
    %c0 = arith.constant 0 : index
    %c0_0 = arith.constant 0 : index
    %0 = vector.load %arg2[%c0, %c0_0] : memref<8x3xf32, #tpu.memory_space<vmem>>, vector<8x3xf32>
    %c3 = arith.constant 3 : index
    %c0_1 = arith.constant 0 : index
    %1 = vector.load %arg3[%c3, %c0_1] : memref<16x128xf32, #tpu.memory_space<vmem>>, vector<1x128xf32>
    %2 = vector.extract_strided_slice %0 {offsets = [0, 0], sizes = [8, 1], strides = [1, 1]} : vector<8x3xf32> to vector<8x1xf32>
    %c0_2 = arith.constant 0 : index
    %c0_3 = arith.constant 0 : index
    %3 = vector.load %arg3[%c0_2, %c0_3] : memref<16x128xf32, #tpu.memory_space<vmem>>, vector<1x128xf32>
    %4 = vector.broadcast %2 : vector<8x1xf32> to vector<8x128xf32>
    %5 = vector.broadcast %3 : vector<1x128xf32> to vector<8x128xf32>
    %6 = arith.mulf %4, %5 : vector<8x128xf32>
    %7 = vector.broadcast %1 : vector<1x128xf32> to vector<8x128xf32>
    %8 = arith.addf %7, %6 : vector<8x128xf32>
    %9 = vector.extract_strided_slice %0 {offsets = [0, 1], sizes = [8, 1], strides = [1, 1]} : vector<8x3xf32> to vector<8x1xf32>
    %c1 = arith.constant 1 : index
    %c0_4 = arith.constant 0 : index
    %10 = vector.load %arg3[%c1, %c0_4] : memref<16x128xf32, #tpu.memory_space<vmem>>, vector<1x128xf32>
    %11 = vector.broadcast %9 : vector<8x1xf32> to vector<8x128xf32>
    %12 = vector.broadcast %10 : vector<1x128xf32> to vector<8x128xf32>
    %13 = arith.mulf %11, %12 : vector<8x128xf32>
    %14 = vector.extract_strided_slice %0 {offsets = [0, 2], sizes = [8, 1], strides = [1, 1]} : vector<8x3xf32> to vector<8x1xf32>
    %c2 = arith.constant 2 : index
    %c0_5 = arith.constant 0 : index
    %15 = vector.load %arg3[%c2, %c0_5] : memref<16x128xf32, #tpu.memory_space<vmem>>, vector<1x128xf32>
    %16 = vector.broadcast %14 : vector<8x1xf32> to vector<8x128xf32>
    %17 = vector.broadcast %15 : vector<1x128xf32> to vector<8x128xf32>
    %18 = arith.mulf %16, %17 : vector<8x128xf32>
    %19 = arith.addf %13, %18 : vector<8x128xf32>
    %20 = arith.addf %8, %19 : vector<8x128xf32>
    %c0_i32 = arith.constant 0 : i32
    %21 = arith.cmpi eq, %arg0, %c0_i32 : i32
    %22 = arith.extui %21 : i1 to i32
    %c0_i32_6 = arith.constant 0 : i32
    %23 = arith.cmpi ne, %22, %c0_i32_6 : i32
    scf.if %23 {
      %c0_i32_8 = arith.constant 0 : i32
      %27 = arith.cmpi eq, %arg1, %c0_i32_8 : i32
      %28 = arith.extui %27 : i1 to i32
      %c0_i32_9 = arith.constant 0 : i32
      %29 = arith.cmpi ne, %28, %c0_i32_9 : i32
      scf.if %29 {
        %cst_21 = arith.constant 0.000000e+00 : f32
        %50 = vector.broadcast %cst_21 : f32 to vector<1x128xf32>
        %c0_22 = arith.constant 0 : index
        %c0_23 = arith.constant 0 : index
        %51 = vector.load %arg5[%c0_22, %c0_23] : memref<1x128xf32, #tpu.memory_space<vmem>>, vector<1x128xf32>
        tpu.vector_store %arg5[%c0_22, %c0_23], %50 {strides = array<i32>} : memref<1x128xf32, #tpu.memory_space<vmem>>, vector<1x128xf32>,
        %cst_24 = arith.constant 0.000000e+00 : f32
        %52 = vector.broadcast %cst_24 : f32 to vector<1x128xf32>
        %c0_25 = arith.constant 0 : index
        %c0_26 = arith.constant 0 : index
        %53 = vector.load %arg6[%c0_25, %c0_26] : memref<1x128xf32, #tpu.memory_space<vmem>>, vector<1x128xf32>
        tpu.vector_store %arg6[%c0_25, %c0_26], %52 {strides = array<i32>} : memref<1x128xf32, #tpu.memory_space<vmem>>, vector<1x128xf32>,
      } else {
      }
      %30 = tpu.iota {dimensions = array<i32: 0>} : vector<8x1xi32>
      %c8_i32 = arith.constant 8 : i32
      %31 = arith.muli %arg1, %c8_i32 : i32
      %c8_i32_10 = arith.constant 8 : i32
      %32 = arith.subi %c8_i32_10, %31 : i32
      %33 = vector.broadcast %32 : i32 to vector<8x1xi32>
      %34 = arith.cmpi slt, %30, %33 : vector<8x1xi32>
      %cst = arith.constant 0.000000e+00 : f32
      %35 = vector.shape_cast %34 : vector<8x1xi1> to vector<8x1xi1>
      %36 = vector.broadcast %35 : vector<8x1xi1> to vector<8x128xi1>
      %37 = vector.broadcast %cst : f32 to vector<8x128xf32>
      %38 = arith.select %36, %20, %37 : vector<8x128xi1>, vector<8x128xf32>
      %c0_11 = arith.constant 0 : index
      %c0_12 = arith.constant 0 : index
      %39 = vector.load %arg5[%c0_11, %c0_12] : memref<1x128xf32, #tpu.memory_space<vmem>>, vector<1x128xf32>
      %cst_13 = arith.constant dense<0.000000e+00> : vector<128xf32>
      %40 = vector.multi_reduction <add>, %38, %cst_13 [0] : vector<8x128xf32> to vector<128xf32>
      %41 = vector.shape_cast %40 : vector<128xf32> to vector<1x128xf32>
      %42 = arith.addf %39, %41 : vector<1x128xf32>
      %c0_14 = arith.constant 0 : index
      %c0_15 = arith.constant 0 : index
      %43 = vector.load %arg5[%c0_14, %c0_15] : memref<1x128xf32, #tpu.memory_space<vmem>>, vector<1x128xf32>
      tpu.vector_store %arg5[%c0_14, %c0_15], %42 {strides = array<i32>} : memref<1x128xf32, #tpu.memory_space<vmem>>, vector<1x128xf32>,
      %c0_16 = arith.constant 0 : index
      %c0_17 = arith.constant 0 : index
      %44 = vector.load %arg6[%c0_16, %c0_17] : memref<1x128xf32, #tpu.memory_space<vmem>>, vector<1x128xf32>
      %45 = arith.mulf %38, %38 : vector<8x128xf32>
      %cst_18 = arith.constant dense<0.000000e+00> : vector<128xf32>
      %46 = vector.multi_reduction <add>, %45, %cst_18 [0] : vector<8x128xf32> to vector<128xf32>
      %47 = vector.shape_cast %46 : vector<128xf32> to vector<1x128xf32>
      %48 = arith.addf %44, %47 : vector<1x128xf32>
      %c0_19 = arith.constant 0 : index
      %c0_20 = arith.constant 0 : index
      %49 = vector.load %arg6[%c0_19, %c0_20] : memref<1x128xf32, #tpu.memory_space<vmem>>, vector<1x128xf32>
      tpu.vector_store %arg6[%c0_19, %c0_20], %48 {strides = array<i32>} : memref<1x128xf32, #tpu.memory_space<vmem>>, vector<1x128xf32>,
    } else {
    }
    %c1_i32 = arith.constant 1 : i32
    %24 = arith.cmpi eq, %arg0, %c1_i32 : i32
    %25 = arith.extui %24 : i1 to i32
    %c0_i32_7 = arith.constant 0 : i32
    %26 = arith.cmpi ne, %25, %c0_i32_7 : i32
    scf.if %26 {
      %c0_8 = arith.constant 0 : index
      %c0_9 = arith.constant 0 : index
      %27 = vector.load %arg5[%c0_8, %c0_9] : memref<1x128xf32, #tpu.memory_space<vmem>>, vector<1x128xf32>
      %cst = arith.constant 1.250000e-01 : f32
      %28 = vector.broadcast %cst : f32 to vector<1x128xf32>
      %29 = arith.mulf %27, %28 : vector<1x128xf32>
      %c0_10 = arith.constant 0 : index
      %c0_11 = arith.constant 0 : index
      %30 = vector.load %arg6[%c0_10, %c0_11] : memref<1x128xf32, #tpu.memory_space<vmem>>, vector<1x128xf32>
      %cst_12 = arith.constant 1.250000e-01 : f32
      %31 = vector.broadcast %cst_12 : f32 to vector<1x128xf32>
      %32 = arith.mulf %30, %31 : vector<1x128xf32>
      %33 = arith.mulf %29, %29 : vector<1x128xf32>
      %34 = arith.subf %32, %33 : vector<1x128xf32>
      %cst_13 = arith.constant 0.000000e+00 : f32
      %35 = vector.broadcast %cst_13 : f32 to vector<1x128xf32>
      %36 = arith.maximumf %34, %35 : vector<1x128xf32>
      %37 = vector.broadcast %29 : vector<1x128xf32> to vector<8x128xf32>
      %38 = arith.subf %20, %37 : vector<8x128xf32>
      %cst_14 = arith.constant 9.99999974E-6 : f32
      %39 = vector.broadcast %cst_14 : f32 to vector<1x128xf32>
      %40 = arith.addf %36, %39 : vector<1x128xf32>
      %41 = math.rsqrt %40 : vector<1x128xf32>
      %42 = vector.broadcast %41 : vector<1x128xf32> to vector<8x128xf32>
      %43 = arith.mulf %38, %42 : vector<8x128xf32>
      %c9 = arith.constant 9 : index
      %c0_15 = arith.constant 0 : index
      %44 = vector.load %arg3[%c9, %c0_15] : memref<16x128xf32, #tpu.memory_space<vmem>>, vector<1x128xf32>
      %45 = vector.extract_strided_slice %43 {offsets = [0, 0], sizes = [8, 1], strides = [1, 1]} : vector<8x128xf32> to vector<8x1xf32>
      %c4 = arith.constant 4 : index
      %c0_16 = arith.constant 0 : index
      %46 = vector.load %arg3[%c4, %c0_16] : memref<16x128xf32, #tpu.memory_space<vmem>>, vector<1x128xf32>
      %47 = vector.broadcast %45 : vector<8x1xf32> to vector<8x128xf32>
      %48 = vector.broadcast %46 : vector<1x128xf32> to vector<8x128xf32>
      %49 = arith.mulf %47, %48 : vector<8x128xf32>
      %50 = vector.broadcast %44 : vector<1x128xf32> to vector<8x128xf32>
      %51 = arith.addf %50, %49 : vector<8x128xf32>
      %52 = vector.extract_strided_slice %43 {offsets = [0, 1], sizes = [8, 1], strides = [1, 1]} : vector<8x128xf32> to vector<8x1xf32>
      %c5 = arith.constant 5 : index
      %c0_17 = arith.constant 0 : index
      %53 = vector.load %arg3[%c5, %c0_17] : memref<16x128xf32, #tpu.memory_space<vmem>>, vector<1x128xf32>
      %54 = vector.broadcast %52 : vector<8x1xf32> to vector<8x128xf32>
      %55 = vector.broadcast %53 : vector<1x128xf32> to vector<8x128xf32>
      %56 = arith.mulf %54, %55 : vector<8x128xf32>
      %57 = vector.extract_strided_slice %43 {offsets = [0, 2], sizes = [8, 1], strides = [1, 1]} : vector<8x128xf32> to vector<8x1xf32>
      %c6 = arith.constant 6 : index
      %c0_18 = arith.constant 0 : index
      %58 = vector.load %arg3[%c6, %c0_18] : memref<16x128xf32, #tpu.memory_space<vmem>>, vector<1x128xf32>
      %59 = vector.broadcast %57 : vector<8x1xf32> to vector<8x128xf32>
      %60 = vector.broadcast %58 : vector<1x128xf32> to vector<8x128xf32>
      %61 = arith.mulf %59, %60 : vector<8x128xf32>
      %62 = arith.addf %56, %61 : vector<8x128xf32>
      %63 = vector.extract_strided_slice %43 {offsets = [0, 3], sizes = [8, 1], strides = [1, 1]} : vector<8x128xf32> to vector<8x1xf32>
      %c7 = arith.constant 7 : index
      %c0_19 = arith.constant 0 : index
      %64 = vector.load %arg3[%c7, %c0_19] : memref<16x128xf32, #tpu.memory_space<vmem>>, vector<1x128xf32>
      %65 = vector.broadcast %63 : vector<8x1xf32> to vector<8x128xf32>
      %66 = vector.broadcast %64 : vector<1x128xf32> to vector<8x128xf32>
      %67 = arith.mulf %65, %66 : vector<8x128xf32>
      %68 = vector.extract_strided_slice %43 {offsets = [0, 4], sizes = [8, 1], strides = [1, 1]} : vector<8x128xf32> to vector<8x1xf32>
      %c8 = arith.constant 8 : index
      %c0_20 = arith.constant 0 : index
      %69 = vector.load %arg3[%c8, %c0_20] : memref<16x128xf32, #tpu.memory_space<vmem>>, vector<1x128xf32>
      %70 = vector.broadcast %68 : vector<8x1xf32> to vector<8x128xf32>
      %71 = vector.broadcast %69 : vector<1x128xf32> to vector<8x128xf32>
      %72 = arith.mulf %70, %71 : vector<8x128xf32>
      %73 = arith.addf %67, %72 : vector<8x128xf32>
      %74 = arith.addf %51, %62 : vector<8x128xf32>
      %75 = arith.addf %74, %73 : vector<8x128xf32>
      %76 = vector.extract_strided_slice %75 {offsets = [0, 0], sizes = [8, 5], strides = [1, 1]} : vector<8x128xf32> to vector<8x5xf32>
      %c0_21 = arith.constant 0 : index
      %c0_22 = arith.constant 0 : index
      %77 = vector.load %arg4[%c0_21, %c0_22] : memref<8x5xf32, #tpu.memory_space<vmem>>, vector<8x5xf32>
      tpu.vector_store %arg4[%c0_21, %c0_22], %76 {strides = array<i32>} : memref<8x5xf32, #tpu.memory_space<vmem>>, vector<8x5xf32>,
    } else {
    }
    return
  }
  func.func @transform_0(%arg0: i32, %arg1: i32) -> (i32, i32) {
    %c0_i32 = arith.constant 0 : i32
    %c0_i32_0 = arith.constant 0 : i32
    return %arg1, %c0_i32 : i32, i32
  }
  func.func @transform_1(%arg0: i32, %arg1: i32) -> (i32, i32) {
    %c0_i32 = arith.constant 0 : i32
    %c0_i32_0 = arith.constant 0 : i32
    %c0_i32_1 = arith.constant 0 : i32
    return %c0_i32, %c0_i32_0 : i32, i32
  }
  func.func @transform_2(%arg0: i32, %arg1: i32) -> (i32, i32) {
    %0 = arith.muli %arg1, %arg0 : i32
    %c0_i32 = arith.constant 0 : i32
    %c0_i32_0 = arith.constant 0 : i32
    return %0, %c0_i32 : i32, i32
  }
}

</mosaic_0001>

<llo_original>
// kernel: model_forward.1
$region0: #{model_forward.1}
  #allocation0 [shape = 'u32[]', space=smem, size = 0x4, offset = 0x4, fixed_abs, tag = 'smem constant byte address 0x4 - core index']
  #allocation1 [shape = 'u32[72,128]{1,0:T(1,128)}', space=vmem, size = 0x9000, scoped, tag = 'internal scratch']
  #allocation2 [shape = 'f32[1,128]{1,0:T(1,128)}', space=vmem, size = 0x200, scoped, tag = 'scratch operand']
  #allocation3 [shape = 'f32[1,128]{1,0:T(1,128)}', space=vmem, size = 0x200, scoped, tag = 'scratch operand']
  %s0 = inlined_call_operand.vmem [shape: f32[8,3], index: 0, kind: input, shape index: {}]
  %s1 = inlined_call_operand.hbm [shape: f32[16,128], index: 1, kind: input, shape index: {}]
  %s2 = inlined_call_operand.hbm [shape: f32[8,5], index: 2, kind: output, shape index: {}]
  %s3 = sld [smem:[#allocation0]]
  $region57: #{model_forward.1} parent=0
    _
  %s5 = ssub.s32 1, %s3
  %s6 = scalar_select 0, %s5, %s3
  $region1: #{model_forward.1} parent=0
    #allocation4 [shape = 'u8[8192]{0}', space=vmem, size = 0x2000, scoped, tag = 'input window, operand 1, single buffered']
    #allocation5 [shape = 's32[2]{0}', space=sflag, size = 0x8, scoped, tag = 'scoped memory for model_forward.1']
    #allocation6 [shape = 's32[2]{0}', space=sflag, size = 0x8, scoped, tag = 'scoped memory for model_forward.1']
    #allocation7 [shape = 'u8[8192]{0}', space=vmem, size = 0x2000, scoped, tag = 'output window, operand 0']
    %7 = vsyncpa [#allocation5], 0
    %8 = vsyncpa [#allocation6], 0
    %s9 = scalar_lea.sflag [#allocation6], 1
    %10 = vsyncpa %s9, 0
    loop: start=0, step=1, limit=4
    $region2: #{model_forward.1} parent=1 // loop_pre_header
      _
    $region3: #{model_forward.1} parent=1 // loop_header
      %s12 = sphi 0, %s16
      %p13 = scmp.ge.s32.totalorder %s12, 4
      %s19 = sphi 0, %s31
      %s20 = sphi 0, %s27
      %s21 = sphi 0, %s19
      %s22 = sphi 0, %s20
      %s23 = sphi 0, %s21
      %s24 = sphi 0, %s22
      %s34 = sphi 0, %s36
      %s37 = sphi 0, %s34
      %s38 = sphi 0, %s37
      %s54 = sphi 0, %s38
      %s58 = sphi 0, %s58
      %s60 = sphi 0, %s58
      %s61 = sphi 0, %s60
      %s75 = sphi 0, %s61
      %s83 = sphi 0, %s85
      %s86 = sphi 0, %s83
      %s87 = sphi 0, %s86
      %s103 = sphi 0, %s87
    $region4: #{model_forward.1} parent=1 // loop_header_branch
      %15 = sbr.rel (%p13) target = $region8
    $region5: #{model_forward.1} parent=1 // loop_body
      %s17 = ssub.s32 %s12, 1
      %s18 = ssub.s32 %s12, 2
      %s25 = sadd.s32 1, %s20
      %p26 = scmp.ge.s32.totalorder %s25, 1
      %s27 = scalar_select %p26, 0, %s25
      %s28 = sadd.s32 1, %s19
      %s29 = scalar_select %p26, %s28, %s19
      %p30 = scmp.ge.s32.totalorder %s29, 2
      %s31 = scalar_select %p30, 0, %s29
      %s32 = ssub.s32 %s20, %s27
      %p33 = scmp.eq.s32.totalorder %s32, 0
      %s35 = sadd.s32 %s34, 1
      %s36 = scalar_select %p33, %s34, %s35
      %p39 = pneg %p33
      %p40 = scmp.eq.s32.totalorder %s12, 1
      %p41 = por %p39, %p40
      %p42 = scmp.ne.s32.totalorder %s34, %s37
      %p43 = scmp.eq.s32.totalorder %s12, 0
      %p44 = por %p42, %p43
      %p45 = scmp.ne.s32.totalorder %s34, %s37
      %p46 = scmp.eq.s32.totalorder %s17, 1
      %p47 = por %p45, %p46
      %p48 = scmp.ne.s32.totalorder %s37, %s38
      %p49 = scmp.eq.s32.totalorder %s17, 0
      %p50 = por %p48, %p49
      %p51 = scmp.ne.s32.totalorder %s37, %s38
      %p52 = scmp.eq.s32.totalorder %s18, 1
      %p53 = por %p51, %p52
      %p55 = scmp.ne.s32.totalorder %s38, %s54
      %p56 = scmp.eq.s32.totalorder %s18, 0
      %p57 = por %p55, %p56
      %s59 = sadd.s32 %s58, 1
      %p62 = scmp.eq.s32.totalorder %s12, 1
      %p63 = scmp.ne.s32.totalorder %s58, %s60
      %p64 = scmp.eq.s32.totalorder %s12, 0
      %p65 = por %p63, %p64
      %p66 = scmp.ne.s32.totalorder %s58, %s60
      %p67 = scmp.eq.s32.totalorder %s17, 1
      %p68 = por %p66, %p67
      %p69 = scmp.ne.s32.totalorder %s60, %s61
      %p70 = scmp.eq.s32.totalorder %s17, 0
      %p71 = por %p69, %p70
      %p72 = scmp.ne.s32.totalorder %s60, %s61
      %p73 = scmp.eq.s32.totalorder %s18, 1
      %p74 = por %p72, %p73
      %p76 = scmp.ne.s32.totalorder %s61, %s75
      %p77 = scmp.eq.s32.totalorder %s18, 0
      %p78 = por %p76, %p77
      %s79 = smul.u32 %s20, %s19
      %s80 = smul.u32 %s27, %s31
      %s81 = ssub.s32 %s79, %s80
      %p82 = scmp.eq.s32.totalorder %s81, 0
      %s84 = sadd.s32 %s83, 1
      %s85 = scalar_select %p82, %s83, %s84
      %p88 = pneg %p82
      %p89 = scmp.eq.s32.totalorder %s12, 1
      %p90 = por %p88, %p89
      %p91 = scmp.ne.s32.totalorder %s83, %s86
      %p92 = scmp.eq.s32.totalorder %s12, 0
      %p93 = por %p91, %p92
      %p94 = scmp.ne.s32.totalorder %s83, %s86
      %p95 = scmp.eq.s32.totalorder %s17, 1
      %p96 = por %p94, %p95
      %p97 = scmp.ne.s32.totalorder %s86, %s87
      %p98 = scmp.eq.s32.totalorder %s17, 0
      %p99 = por %p97, %p98
      %p100 = scmp.ne.s32.totalorder %s86, %s87
      %p101 = scmp.eq.s32.totalorder %s18, 1
      %p102 = por %p100, %p101
      %p104 = scmp.ne.s32.totalorder %s87, %s103
      %p105 = scmp.eq.s32.totalorder %s18, 0
      %p106 = por %p104, %p105
      %p107 = scmp.le.s32.totalorder 1, %s12
      %p108 = scmp.lt.s32.totalorder %s12, 3
      %p109 = pnand %p107, %p108
      %p110 = pneg %p109
      // Predicated region
      $region9: #{model_forward.1} parent=5 // pred_check
        _
      $region10: #{model_forward.1} parent=5 // pred_check_branch
        %112 = sbr.rel (%p109) target = $region12
      $region11: #{model_forward.1} parent=5 // pred_region
        %s113 = ssub.s32 %s12, 1
        // Predicated region
        $region13: #{model_forward.1} parent=11 // pred_check
          %p114 = pneg %p50
        $region14: #{model_forward.1} parent=11 // pred_check_branch
          %116 = sbr.rel (%p114) target = $region16
        $region15: #{model_forward.1} parent=11 // pred_region
          %p117 = scmp.lt.s32.totalorder %s22, 0
          %s118 = scalar_select %p117, %s22, 0
          %s119 = smul.addr %s118, 8
          %s120 = scalar_lea.vmem %s0, %s119
        $region16: #{model_forward.1} parent=11 // pred_fallthru
          _
        // Predicated region
        $region17: #{model_forward.1} parent=11 // pred_check
          %p121 = pneg %p71
        $region18: #{model_forward.1} parent=11 // pred_check_branch
          %123 = sbr.rel (%p121) target = $region20
        $region19: #{model_forward.1} parent=11 // pred_region
          %125 = vsyncadd [#allocation5], 0
          %s126 = sshll.u32 %s1, 4
          %s127 = int_to_ptr.hbm [resolvable:$true] %s126
          %s128 = sshll.u32 [#allocation4], 4
          %s129 = int_to_ptr.vmem [resolvable:$true] %s128
          %134 = dma.hbm_to_vmem [thread:$0]  %s127, 256, %s129, [#allocation5], 128, 128, 8
        $region20: #{model_forward.1} parent=11 // pred_fallthru
          _
      $region12: #{model_forward.1} parent=5 // pred_fallthru
        _
      %p135 = scmp.lt.s32.totalorder %s12, 2
      // Predicated region
      $region21: #{model_forward.1} parent=5 // pred_check
        %p136 = pneg %p135
      $region22: #{model_forward.1} parent=5 // pred_check_branch
        %138 = sbr.rel (%p136) target = $region24
      $region23: #{model_forward.1} parent=5 // pred_region
        _
      $region24: #{model_forward.1} parent=5 // pred_fallthru
        _
      %p139 = scmp.le.s32.totalorder 1, %s12
      %p140 = scmp.lt.s32.totalorder %s12, 3
      %p141 = pnand %p139, %p140
      %p142 = pneg %p141
      // Predicated region
      $region25: #{model_forward.1} parent=5 // pred_check
        _
      $region26: #{model_forward.1} parent=5 // pred_check_branch
        %144 = sbr.rel (%p141) target = $region28
      $region27: #{model_forward.1} parent=5 // pred_region
        %s145 = ssub.s32 %s12, 1
        // Predicated region
        $region29: #{model_forward.1} parent=27 // pred_check
          %p146 = pneg %p71
        $region30: #{model_forward.1} parent=27 // pred_check_branch
          %148 = sbr.rel (%p146) target = $region32
        $region31: #{model_forward.1} parent=27 // pred_region
          %150 = dma.done [#allocation5], 256
        $region32: #{model_forward.1} parent=27 // pred_fallthru
          _
        %p151 = scmp.lt.s32.totalorder %s22, 0
        %s152 = scalar_select %p151, %s22, 0
        %s153 = smul.addr %s152, 8
        %s154 = scalar_lea.vmem %s0, %s153
        %p155 = pneg %p50
        %p156 = pneg %p47
        %p157 = pneg %p71
        %p158 = pneg %p68
        %p159 = pneg %p99
        %p160 = pneg %p96
        %s161 = sand.u32 %s86, 1
        %s162 = scalar_lea.sflag [#allocation6], %s161
        %s163 = sand.u32 %s86, 1
        %s164 = smul.addr %s163, 8
        %s165 = scalar_lea.vmem [#allocation7], %s164
        %p166 = scmp.lt.s32.totalorder %s22, 0
        %s167 = scalar_select %p166, %s22, 0
        %s168 = smul.addr %s167, 8
        %s169 = scalar_lea.vmem %s0, %s168
        %s170 = smul.u32 %s22, %s21
        %v171 = vld [vmem:[%s169] sm:$0xff]
        %v172 = vld [vmem:[#allocation4 + $0x3] sm:$0x1]
        %v173 = vld [vmem:[#allocation4] sm:$0x1]
        %175 = vset.pattern.permute.xlu0 0
        %176 = vperm.xlu0 %175, %v171
        %v177 = vpop.permute.xlu0 %176
        %v179 = vperm.slane %v173, 0
        %v180 = vmul.f32 %v177, %v179
        %v181 = vperm.slane %v172, 0
        %v182 = vadd.f32 %v181, %v180
        %v183 = vld [vmem:[#allocation4 + $0x1] sm:$0x1]
        %184 = vset.pattern.permute.xlu0 1
        %185 = vperm.xlu0 %184, %v171
        %v186 = vpop.permute.xlu0 %185
        %v188 = vperm.slane %v183, 0
        %v189 = vmul.f32 %v186, %v188
        %v190 = vld [vmem:[#allocation4 + $0x2] sm:$0x1]
        %191 = vset.pattern.permute.xlu0 2
        %192 = vperm.xlu0 %191, %v171
        %v193 = vpop.permute.xlu0 %192
        %v195 = vperm.slane %v190, 0
        %v196 = vmul.f32 %v193, %v195
        %v197 = vadd.f32 %v189, %v196
        %v198 = vadd.f32 %v182, %v197
        %p199 = scmp.eq.s32.totalorder %s21, 0
        // Predicated region
        $region33: #{model_forward.1} parent=27 // pred_check
          %p200 = pneg %p199
        $region34: #{model_forward.1} parent=27 // pred_check_branch
          %202 = sbr.rel (%p200) target = $region36
        $region35: #{model_forward.1} parent=27 // pred_region
          %p203 = scmp.eq.s32.totalorder %s22, 0
          // Predicated region
          $region37: #{model_forward.1} parent=35 // pred_check
            %p204 = pneg %p203
          $region38: #{model_forward.1} parent=35 // pred_check_branch
            %206 = sbr.rel (%p204) target = $region40
          $region39: #{model_forward.1} parent=35 // pred_region
            %207 = vst [vmem:[#allocation2] sm:$0x1] 0.0
            %208 = vst [vmem:[#allocation3] sm:$0x1] 0.0
          $region40: #{model_forward.1} parent=35 // pred_fallthru
            _
          %v209 = vlaneseq
          %v210 = vshrl.u32 %v209, 7
          %s211 = smul.u32 %s22, 8
          %s212 = ssub.s32 8, %s211
          %v213 = vstv %s212
          %vm214 = vcmp.lt.s32.totalorder %v210, %v213
          %v215 = vsel %vm214, 1, 0
          %vm216 = vcmp.eq.s32.totalorder %v215, 1
          %v217 = vsel %vm216, %v198, 0.0
          %v218 = vld [vmem:[#allocation2] sm:$0x1]
          %v219 = vrot.slane %v217, 4
          %v220 = vadd.f32 %v217, %v219
          %v221 = vrot.slane %v220, 2
          %v222 = vadd.f32 %v220, %v221
          %v223 = vrot.slane %v222, 1
          %v224 = vadd.f32 %v222, %v223
          %v225 = vadd.f32 %v218, %v224
          %226 = vst [vmem:[#allocation2] sm:$0x1] %v225
          %v227 = vld [vmem:[#allocation3] sm:$0x1]
          %v228 = vmul.f32 %v217, %v217
          %v229 = vrot.slane %v228, 4
          %v230 = vadd.f32 %v228, %v229
          %v231 = vrot.slane %v230, 2
          %v232 = vadd.f32 %v230, %v231
          %v233 = vrot.slane %v232, 1
          %v234 = vadd.f32 %v232, %v233
          %v235 = vadd.f32 %v227, %v234
          %236 = vst [vmem:[#allocation3] sm:$0x1] %v235
        $region36: #{model_forward.1} parent=27 // pred_fallthru
          _
        %p237 = scmp.eq.s32.totalorder %s21, 1
        // Predicated region
        $region41: #{model_forward.1} parent=27 // pred_check
          %p238 = pneg %p237
        $region42: #{model_forward.1} parent=27 // pred_check_branch
          %240 = sbr.rel (%p238) target = $region44
        $region43: #{model_forward.1} parent=27 // pred_region
          %v241 = vld [vmem:[#allocation2] sm:$0x1]
          %v242 = vmul.f32 %v241, 0.125
          %v243 = vld [vmem:[#allocation3] sm:$0x1]
          %v244 = vmul.f32 %v243, 0.125
          %v245 = vmul.f32 %v242, %v242
          %v246 = vsub.f32 %v244, %v245
          %v247 = vmax.f32 %v246, 0.0
          %v249 = vperm.slane %v242, 0
          %v251 = vsub.f32 %v198, %v249
          %v252 = vadd.f32 %v247, 1e-05
          %v253 = vrsqrt.pop %v252
          %v254 = vmul.f32 %v253, %v252
          %v255 = vmul.f32 %v254, %v253
          %v256 = vmul.f32 0.5, %v255
          %v257 = vsub.f32 1.5, %v256
          %v258 = vmul.f32 %v253, %v257
          %vm259 = vweird.f32 %v252
          %vm260 = vweird.f32 %v253
          %vm261 = vmor %vm259, %vm260
          %v262 = vsel %vm261, %v253, %v258
          %v264 = vperm.slane %v262, 0
          %v266 = vmul.f32 %v251, %v264
          %v267 = vld [vmem:[#allocation4 + $0x9] sm:$0x1]
          %v268 = vld [vmem:[#allocation4 + $0x4] sm:$0x1]
          %270 = vset.pattern.permute.xlu0 0
          %271 = vperm.xlu0 %270, %v266
          %v272 = vpop.permute.xlu0 %271
          %v274 = vperm.slane %v268, 0
          %v275 = vmul.f32 %v272, %v274
          %v276 = vperm.slane %v267, 0
          %v277 = vadd.f32 %v276, %v275
          %v278 = vld [vmem:[#allocation4 + $0x5] sm:$0x1]
          %279 = vset.pattern.permute.xlu0 1
          %280 = vperm.xlu0 %279, %v266
          %v281 = vpop.permute.xlu0 %280
          %v283 = vperm.slane %v278, 0
          %v284 = vmul.f32 %v281, %v283
          %v285 = vld [vmem:[#allocation4 + $0x6] sm:$0x1]
          %286 = vset.pattern.permute.xlu0 2
          %287 = vperm.xlu0 %286, %v266
          %v288 = vpop.permute.xlu0 %287
          %v290 = vperm.slane %v285, 0
          %v291 = vmul.f32 %v288, %v290
          %v292 = vadd.f32 %v284, %v291
          %v293 = vld [vmem:[#allocation4 + $0x7] sm:$0x1]
          %294 = vset.pattern.permute.xlu0 3
          %295 = vperm.xlu0 %294, %v266
          %v296 = vpop.permute.xlu0 %295
          %v298 = vperm.slane %v293, 0
          %v299 = vmul.f32 %v296, %v298
          %v300 = vld [vmem:[#allocation4 + $0x8] sm:$0x1]
          %301 = vset.pattern.permute.xlu0 4
          %302 = vperm.xlu0 %301, %v266
          %v303 = vpop.permute.xlu0 %302
          %v305 = vperm.slane %v300, 0
          %v306 = vmul.f32 %v303, %v305
          %v307 = vadd.f32 %v299, %v306
          %v308 = vadd.f32 %v277, %v292
          %v309 = vadd.f32 %v308, %v307
          %vm310 = vcmask 39936
          %311 = vst.msk [vmem:[%s165] sm:$0xff] %vm310, %v309
        $region44: #{model_forward.1} parent=27 // pred_fallthru
          _
        %s312 = sand.u32 %s86, 1
        %s313 = scalar_lea.sflag [#allocation6], %s312
        %s314 = sand.u32 %s86, 1
        %s315 = smul.addr %s314, 8
        %s316 = scalar_lea.vmem [#allocation7], %s315
        // Predicated region
        $region45: #{model_forward.1} parent=27 // pred_check
          %p317 = pneg %p96
        $region46: #{model_forward.1} parent=27 // pred_check_branch
          %319 = sbr.rel (%p317) target = $region48
        $region47: #{model_forward.1} parent=27 // pred_region
          %s320 = smul.u32 %s22, %s21
          %322 = vsyncadd %s313, 0
          %s323 = smul.addr %s320, 8
          %s324 = scalar_lea.hbm %s2, %s323
          %s326 = sshll.u32 %s316, 4
          %s327 = int_to_ptr.vmem [resolvable:$true] %s326
          %s328 = sshll.u32 %s324, 4
          %s329 = int_to_ptr.hbm [resolvable:$true] %s328
          %331 = dma.vmem_to_hbm [thread:$0]  %s327, 128, %s329, %s313
        $region48: #{model_forward.1} parent=27 // pred_fallthru
          _
      $region28: #{model_forward.1} parent=5 // pred_fallthru
        _
      %p332 = scmp.le.s32.totalorder 2, %s12
      // Predicated region
      $region49: #{model_forward.1} parent=5 // pred_check
        %p333 = pneg %p332
      $region50: #{model_forward.1} parent=5 // pred_check_branch
        %335 = sbr.rel (%p333) target = $region52
      $region51: #{model_forward.1} parent=5 // pred_region
        %s336 = ssub.s32 %s12, 2
        // Predicated region
        $region53: #{model_forward.1} parent=51 // pred_check
          %p337 = pneg %p102
        $region54: #{model_forward.1} parent=51 // pred_check_branch
          %339 = sbr.rel (%p337) target = $region56
        $region55: #{model_forward.1} parent=51 // pred_region
          %s340 = sand.u32 %s87, 1
          %s341 = scalar_lea.sflag [#allocation6], %s340
          %s342 = sand.u32 %s87, 1
          %s343 = smul.addr %s342, 8
          %s344 = scalar_lea.vmem [#allocation7], %s343
          %346 = dma.done %s341, 128
        $region56: #{model_forward.1} parent=51 // pred_fallthru
          _
      $region52: #{model_forward.1} parent=5 // pred_fallthru
        _
    $region6: #{model_forward.1} parent=1 // loop_footer
      %s16 = sadd.s32 1, %s12
    $region7: #{model_forward.1} parent=1 // loop_footer_branch
      %11 = sbr.rel target = $region3
    $region8: #{model_forward.1} parent=1 // loop_exit
      _
    %347 = vsyncpa [#allocation5], 1
    %s348 = scalar_lea.sflag [#allocation5], 1
    %349 = vsyncpa %s348, 1
    %350 = vsyncpa [#allocation6], 1
    %s351 = scalar_lea.sflag [#allocation6], 1
    %352 = vsyncpa %s351, 1

</llo_original>
